<compile_context>
chip_gen: v5e
topology: v5e:2x2
jax: 0.10.0
libtpu: 0.0.40
codegen_flags: <defaults>
</compile_context>

<pallas_src>
import functools

import jax
import jax.numpy as jnp
from jax import lax
from jax.experimental import pallas as pl
from jax.experimental.pallas import tpu as pltpu

LANES = 128
SUBLANES = 8


def _nll_dot_kernel(pred_ref, tgt_ref, out_ref, *, n, tile_rows, needs_mask):
    """One grid step: reduce a (tile_rows, 128) tile to a (8, 128) partial.

    out_ref block i holds the partial sum of targets*log(predictions) for tile i
    in its first row (remaining 7 rows are zero).  The wrapper sums all partials
    and negates.
    """
    i = pl.program_id(0)

    p = pred_ref[...].astype(jnp.float32)
    t = tgt_ref[...].astype(jnp.float32)

    if needs_mask:
        # Mask out (a) lane-padding past the true length n and (b) garbage rows
        # of a partial last block.  Invalid positions get p=1 (log(1)=0), t=0,
        # so they contribute exactly 0 and never feed NaN/Inf into the sum.
        # (int32 index math: fine for n < 2**31 elements.)
        row = lax.broadcasted_iota(jnp.int32, (tile_rows, LANES), 0)
        lane = lax.broadcasted_iota(jnp.int32, (tile_rows, LANES), 1)
        idx = (i * tile_rows + row) * LANES + lane
        valid = idx < n
        p = jnp.where(valid, p, 1.0)
        t = jnp.where(valid, t, 0.0)

    # Reduce only along the row axis (cheap, hidden under the input DMAs).
    partial = jnp.sum(t * jnp.log(p), axis=0, keepdims=True)  # (1, LANES) f32

    # Place the (1,128) partial into row 0 of this step's (8,128) output block
    # (keeps the output block (8,128)-tiled and lane-dense).
    sub = lax.broadcasted_iota(jnp.int32, (SUBLANES, LANES), 0)
    out_ref[...] = jnp.where(sub == 0, partial, 0.0)


def my_loss(predictions, targets, *, tile_rows=1024):
    """-sum(targets * log(predictions)) over all elements; returns an f32 scalar."""
    p = jnp.ravel(predictions)  # copy-free reshape for contiguous inputs
    t = jnp.ravel(targets)
    n = p.shape[0]
    if n == 0:
        return jnp.float32(0.0)

    # Only pad (one copy) when the length is not a multiple of 128; the padded
    # tail is masked out inside the kernel anyway.
    rem = n % LANES
    if rem:
        pad = LANES - rem
        p = jnp.pad(p, (0, pad), constant_values=1)  # log(1) = 0
        t = jnp.pad(t, (0, pad), constant_values=0)

    rows = p.shape[0] // LANES
    p2 = p.reshape(rows, LANES)  # copy-free
    t2 = t.reshape(rows, LANES)

    # Effective tile height: a multiple of 8, or the full row count for tiny inputs.
    tr = min(int(tile_rows), rows)
    if tr < rows:
        tr = max(SUBLANES, (tr // SUBLANES) * SUBLANES)
    num_tiles = pl.cdiv(rows, tr)
    # Mask only if the tiles cover more elements than n (ragged tail and/or a
    # partial last block); statically decided, so the aligned fast path has
    # zero masking overhead.
    needs_mask = (num_tiles * tr * LANES) != n

    kernel = functools.partial(
        _nll_dot_kernel, n=n, tile_rows=tr, needs_mask=needs_mask
    )

    partials = pl.pallas_call(
        kernel,
        out_shape=jax.ShapeDtypeStruct((num_tiles * SUBLANES, LANES), jnp.float32),
        grid_spec=pltpu.PrefetchScalarGridSpec(
            num_scalar_prefetch=0,
            grid=(num_tiles,),
            in_specs=[
                pl.BlockSpec((tr, LANES), lambda i: (i, 0)),
                pl.BlockSpec((tr, LANES), lambda i: (i, 0)),
            ],
            out_specs=pl.BlockSpec((SUBLANES, LANES), lambda i: (i, 0)),
        ),
        compiler_params=pltpu.CompilerParams(
            # Independent per-tile partials -> parallel grid; on v7x this shards
            # the reduction across both TensorCores.
            dimension_semantics=("parallel",),
        ),
    )(p2, t2)

    # Single cross-lane reduce + negate, once, outside the kernel.
    return -jnp.sum(partials)


if __name__ == "__main__":
    key = jax.random.PRNGKey(0)
    k1, k2, k3, k4 = jax.random.split(key, 4)

    # Logistic-regression-1d style inputs: predictions are sigmoid outputs in
    # (0, 1), targets are 0/1 labels, shape (batch, 1).
    batch = 8
    predictions = jax.nn.sigmoid(jax.random.normal(k1, (batch, 1), dtype=jnp.float32))
    targets = jax.random.bernoulli(k2, 0.5, (batch, 1)).astype(jnp.float32)

    loss = my_loss(predictions, targets)
    jax.block_until_ready(loss)
    ref = -jnp.dot(targets.reshape(-1), jnp.log(predictions.reshape(-1)))
    assert jnp.allclose(loss, ref, rtol=1e-6, atol=1e-6), (loss, ref)

    # Extra check: multi-tile grid, partial last block, and lane-tail masking.
    n2 = 5000
    p_big = jax.nn.sigmoid(jax.random.normal(k3, (n2,), dtype=jnp.float32))
    t_big = jax.random.bernoulli(k4, 0.5, (n2,)).astype(jnp.float32)
    loss2 = my_loss(p_big, t_big, tile_rows=8)
    jax.block_until_ready(loss2)
    ref2 = -jnp.dot(t_big, jnp.log(p_big))
    assert jnp.allclose(loss2, ref2, rtol=1e-5, atol=1e-5), (loss2, ref2)

    print("KERNEL_OK")
</pallas_src>

<mosaic_0001>
module attributes {stable_mosaic.version = 11 : i64} {
  func.func @_nll_dot_kernel(%arg0: i32, %arg1: memref<1x128xf32, #tpu.memory_space<vmem>>, %arg2: memref<1x128xf32, #tpu.memory_space<vmem>>, %arg3: memref<8x128xf32, #tpu.memory_space<vmem>>) attributes {dimension_semantics = [#tpu.dimension_semantics<parallel>], iteration_bounds = array<i64: 1>, scalar_prefetch = 0 : i64, scratch_operands = 0 : i64, tpu.core_type = #tpu.core_type<tc>, window_params = [{transform_indices = @transform_0, window_bounds = array<i64: 1, 128>}, {transform_indices = @transform_1, window_bounds = array<i64: 1, 128>}, {transform_indices = @transform_2, window_bounds = array<i64: 8, 128>}]} {
    %c0 = arith.constant 0 : index
    %c0_0 = arith.constant 0 : index
    %0 = vector.load %arg1[%c0, %c0_0] : memref<1x128xf32, #tpu.memory_space<vmem>>, vector<1x128xf32>
    %c0_1 = arith.constant 0 : index
    %c0_2 = arith.constant 0 : index
    %1 = vector.load %arg2[%c0_1, %c0_2] : memref<1x128xf32, #tpu.memory_space<vmem>>, vector<1x128xf32>
    %2 = tpu.iota {dimensions = array<i32: 0>} : vector<1x128xi32>
    %3 = tpu.iota {dimensions = array<i32: 1>} : vector<1x128xi32>
    %c1_i32 = arith.constant 1 : i32
    %4 = arith.muli %arg0, %c1_i32 : i32
    %5 = vector.broadcast %4 : i32 to vector<1x128xi32>
    %6 = arith.addi %5, %2 : vector<1x128xi32>
    %c128_i32 = arith.constant 128 : i32
    %7 = vector.broadcast %c128_i32 : i32 to vector<1x128xi32>
    %8 = arith.muli %6, %7 : vector<1x128xi32>
    %9 = arith.addi %8, %3 : vector<1x128xi32>
    %c8_i32 = arith.constant 8 : i32
    %10 = vector.broadcast %c8_i32 : i32 to vector<1x128xi32>
    %11 = arith.cmpi slt, %9, %10 : vector<1x128xi32>
    %cst = arith.constant 1.000000e+00 : f32
    %12 = vector.broadcast %cst : f32 to vector<1x128xf32>
    %13 = arith.select %11, %0, %12 : vector<1x128xi1>, vector<1x128xf32>
    %cst_3 = arith.constant 0.000000e+00 : f32
    %14 = vector.broadcast %cst_3 : f32 to vector<1x128xf32>
    %15 = arith.select %11, %1, %14 : vector<1x128xi1>, vector<1x128xf32>
    %16 = math.log %13 : vector<1x128xf32>
    %17 = arith.mulf %15, %16 : vector<1x128xf32>
    %cst_4 = arith.constant dense<0.000000e+00> : vector<128xf32>
    %18 = vector.multi_reduction <add>, %17, %cst_4 [0] : vector<1x128xf32> to vector<128xf32>
    %19 = vector.shape_cast %18 : vector<128xf32> to vector<1x128xf32>
    %20 = tpu.iota {dimensions = array<i32: 0>} : vector<8x128xi32>
    %c0_i32 = arith.constant 0 : i32
    %21 = vector.broadcast %c0_i32 : i32 to vector<8x128xi32>
    %22 = arith.cmpi eq, %20, %21 : vector<8x128xi32>
    %cst_5 = arith.constant 0.000000e+00 : f32
    %23 = vector.shape_cast %19 : vector<1x128xf32> to vector<1x128xf32>
    %24 = vector.broadcast %23 : vector<1x128xf32> to vector<8x128xf32>
    %25 = vector.broadcast %cst_5 : f32 to vector<8x128xf32>
    %26 = arith.select %22, %24, %25 : vector<8x128xi1>, vector<8x128xf32>
    %c0_6 = arith.constant 0 : index
    %c0_7 = arith.constant 0 : index
    %27 = vector.load %arg3[%c0_6, %c0_7] : memref<8x128xf32, #tpu.memory_space<vmem>>, vector<8x128xf32>
    tpu.vector_store %arg3[%c0_6, %c0_7], %26 {strides = array<i32>} : memref<8x128xf32, #tpu.memory_space<vmem>>, vector<8x128xf32>,
    return
  }
  func.func @transform_0(%arg0: i32) -> (i32, i32) {
    %c0_i32 = arith.constant 0 : i32
    %c0_i32_0 = arith.constant 0 : i32
    return %arg0, %c0_i32 : i32, i32
  }
  func.func @transform_1(%arg0: i32) -> (i32, i32) {
    %c0_i32 = arith.constant 0 : i32
    %c0_i32_0 = arith.constant 0 : i32
    return %arg0, %c0_i32 : i32, i32
  }
  func.func @transform_2(%arg0: i32) -> (i32, i32) {
    %c0_i32 = arith.constant 0 : i32
    %c0_i32_0 = arith.constant 0 : i32
    return %arg0, %c0_i32 : i32, i32
  }
}

</mosaic_0001>

<llo_original>
// kernel: tpu_custom_call.1
$region0: #{tpu_custom_call.1}
  #allocation0 [shape = 'u32[]', space=smem, size = 0x4, offset = 0x4, fixed_abs, tag = 'smem constant byte address 0x4 - core index']
  #allocation1 [shape = 'u32[72,128]{1,0:T(1,128)}', space=vmem, size = 0x9000, scoped, tag = 'internal scratch']
  %s0 = inlined_call_operand.hbm [shape: f32[1,128], index: 0, kind: input, shape index: {}]
  %s1 = inlined_call_operand.hbm [shape: f32[1,128], index: 1, kind: input, shape index: {}]
  %s2 = inlined_call_operand.hbm [shape: f32[8,128], index: 2, kind: output, shape index: {}]
  %s3 = sld [smem:[#allocation0]]
  $region26: #{tpu_custom_call.1} parent=0
    _
  %s5 = ssub.s32 1, %s3
  %s6 = scalar_select 0, %s5, %s3
  $region1: #{tpu_custom_call.1} parent=0
    #allocation2 [shape = 'u8[512]{0}', space=vmem, size = 0x400, scoped, tag = 'input window, operand 0, single buffered']
    #allocation3 [shape = 's32[1]{0}', space=sflag, size = 0x4, scoped, tag = 'scoped memory for tpu_custom_call.1']
    #allocation4 [shape = 's32[1]{0}', space=sflag, size = 0x4, scoped, tag = 'scoped memory for tpu_custom_call.1']
    #allocation5 [shape = 'u8[512]{0}', space=vmem, size = 0x400, scoped, tag = 'input window, operand 1, single buffered']
    #allocation6 [shape = 's32[1]{0}', space=sflag, size = 0x4, scoped, tag = 'scoped memory for tpu_custom_call.1']
    #allocation7 [shape = 'u8[4096]{0}', space=vmem, size = 0x1000, scoped, tag = 'output window, operand 0, single buffered']
    %7 = vsyncpa [#allocation3], 0
    %8 = vsyncpa [#allocation6], 0
    %9 = vsyncpa [#allocation4], 0
    // Predicated region
    $region2: #{tpu_custom_call.1} parent=1 // pred_check
      _
    $region3: #{tpu_custom_call.1} parent=1 // pred_check_branch
      %11 = sbr.rel (0) target = $region5
    $region4: #{tpu_custom_call.1} parent=1 // pred_region
      %13 = vsyncadd [#allocation3], 0
      %s15 = sshll.u32 %s0, 4
      %s16 = int_to_ptr.hbm [resolvable:$true] %s15
      %s17 = sshll.u32 [#allocation2], 4
      %s18 = int_to_ptr.vmem [resolvable:$true] %s17
      %20 = dma.hbm_to_vmem [thread:$0]  %s16, 16, %s18, [#allocation3]
    $region5: #{tpu_custom_call.1} parent=1 // pred_fallthru
      _
    // Predicated region
    $region6: #{tpu_custom_call.1} parent=1 // pred_check
      _
    $region7: #{tpu_custom_call.1} parent=1 // pred_check_branch
      %22 = sbr.rel (0) target = $region9
    $region8: #{tpu_custom_call.1} parent=1 // pred_region
      %24 = vsyncadd [#allocation6], 0
      %s26 = sshll.u32 %s1, 4
      %s27 = int_to_ptr.hbm [resolvable:$true] %s26
      %s28 = sshll.u32 [#allocation5], 4
      %s29 = int_to_ptr.vmem [resolvable:$true] %s28
      %31 = dma.hbm_to_vmem [thread:$0]  %s27, 16, %s29, [#allocation6]
    $region9: #{tpu_custom_call.1} parent=1 // pred_fallthru
      _
    // Predicated region
    $region10: #{tpu_custom_call.1} parent=1 // pred_check
      _
    $region11: #{tpu_custom_call.1} parent=1 // pred_check_branch
      %33 = sbr.rel (0) target = $region13
    $region12: #{tpu_custom_call.1} parent=1 // pred_region
      %35 = dma.done [#allocation3], 16
    $region13: #{tpu_custom_call.1} parent=1 // pred_fallthru
      _
    // Predicated region
    $region14: #{tpu_custom_call.1} parent=1 // pred_check
      _
    $region15: #{tpu_custom_call.1} parent=1 // pred_check_branch
      %37 = sbr.rel (0) target = $region17
    $region16: #{tpu_custom_call.1} parent=1 // pred_region
      %39 = dma.done [#allocation6], 16
    $region17: #{tpu_custom_call.1} parent=1 // pred_fallthru
      _
    %v40 = vld [vmem:[#allocation2] sm:$0x1]
    %v41 = vld [vmem:[#allocation5] sm:$0x1]
    %v42 = vlaneseq
    %v43 = vshrl.u32 %v42, 7
    %v44 = vlaneseq
    %v45 = vand.u32 %v44, 127
    %v46 = vstv 0
    %v47 = vadd.s32 %v46, %v43
    %v48 = vmul.u32 %v47, 128
    %v49 = vadd.s32 %v48, %v45
    %vm50 = vcmp.lt.s32.totalorder %v49, 8
    %v51 = vsel %vm50, %v40, 1.0
    %v52 = vsel %vm50, %v41, 0.0
    %v53 = vlog2.pop %v51
    %v54 = vmul.f32 %v53, 0.6931472
    %v55 = vmul.f32 %v52, %v54
    %v56 = vadd.f32 %v55, 0.0
    %vm57 = vcmp.eq.s32.totalorder %v43, 0
    %v58 = vperm.slane %v56, 0
    %v59 = vsel %vm57, %v58, 0.0
    %60 = vst [vmem:[#allocation7] sm:$0xff] %v59
    // Predicated region
    $region18: #{tpu_custom_call.1} parent=1 // pred_check
      _
    $region19: #{tpu_custom_call.1} parent=1 // pred_check_branch
      %62 = sbr.rel (0) target = $region21
    $region20: #{tpu_custom_call.1} parent=1 // pred_region
      %64 = vsyncadd [#allocation4], 0
      %s66 = sshll.u32 [#allocation7], 4
      %s67 = int_to_ptr.vmem [resolvable:$true] %s66
      %s68 = sshll.u32 %s2, 4
      %s69 = int_to_ptr.hbm [resolvable:$true] %s68
      %71 = dma.vmem_to_hbm [thread:$0]  %s67, 128, %s69, [#allocation4]
    $region21: #{tpu_custom_call.1} parent=1 // pred_fallthru
      _
    // Predicated region
    $region22: #{tpu_custom_call.1} parent=1 // pred_check
      _
    $region23: #{tpu_custom_call.1} parent=1 // pred_check_branch
      %73 = sbr.rel (0) target = $region25
    $region24: #{tpu_custom_call.1} parent=1 // pred_region
      %75 = dma.done [#allocation4], 128
    $region25: #{tpu_custom_call.1} parent=1 // pred_fallthru
      _
    %76 = vsyncpa [#allocation3], 1
    %77 = vsyncpa [#allocation6], 1
    %78 = vsyncpa [#allocation4], 1

</llo_original>
